<compile_context>
chip_gen: v5e
topology: v5e:2x2
jax: 0.10.0
libtpu: 0.0.40
codegen_flags: <defaults>
</compile_context>

<pallas_src>
import functools

import jax
import jax.numpy as jnp
import numpy as np
from jax.experimental import pallas as pl
from jax.experimental.pallas import tpu as pltpu

NEG_SLOPE = 0.01   # nn.LeakyReLU default negative_slope
BN_EPS = 1e-5      # nn.BatchNorm2d default eps
LANE = 128


def _round_up(x, m):
    return (x + m - 1) // m * m


# ----------------------------- Pallas kernel --------------------------------

def _conv_encoder_kernel(x_ref, t1_ref, s1_ref, t2_ref, s2_ref, o_ref, y1_ref, *, h):
    """Fused ConvBlock (conv3x3+BN+LeakyReLU x2) for one image.

    x_ref : (1, H+2, K1) bf16  zero row-halo'd input slab, lane-padded to K1
    t1_ref: (3, K1, NP)  bf16  banded layer-1 weights (BN scale folded in)
    s1_ref: (1, NP)      f32   folded layer-1 conv-bias + BN shift
    t2_ref: (3, NP, NP)  bf16  banded layer-2 weights (BN scale folded in)
    s2_ref: (1, NP)      f32   folded layer-2 conv-bias + BN shift
    o_ref : (1, H, NP)   bf16  pre-pool activations (pool + transpose in wrapper)
    y1_ref: (H+2, NP)    f32   VMEM scratch: layer-1 output with zero row halo
    """
    # ---- layer 1: three row-shifted MXU matmuls against the banded weights ----
    acc = jnp.dot(x_ref[0, 0:h, :], t1_ref[0], preferred_element_type=jnp.float32)
    acc += jnp.dot(x_ref[0, 1:h + 1, :], t1_ref[1], preferred_element_type=jnp.float32)
    acc += jnp.dot(x_ref[0, 2:h + 2, :], t1_ref[2], preferred_element_type=jnp.float32)
    y1 = acc + s1_ref[...]                       # folded bias + BN shift
    y1 = jnp.maximum(y1, NEG_SLOPE * y1)         # LeakyReLU

    # stash layer-1 activations in VMEM with a zero row halo (layer-2 "SAME" padding)
    y1_ref[...] = jnp.zeros_like(y1_ref)
    y1_ref[1:h + 1, :] = y1

    # ---- layer 2: same banded-matmul structure on the VMEM-resident slab ----
    acc2 = jnp.dot(y1_ref[0:h, :].astype(jnp.bfloat16), t2_ref[0],
                   preferred_element_type=jnp.float32)
    acc2 += jnp.dot(y1_ref[1:h + 1, :].astype(jnp.bfloat16), t2_ref[1],
                    preferred_element_type=jnp.float32)
    acc2 += jnp.dot(y1_ref[2:h + 2, :].astype(jnp.bfloat16), t2_ref[2],
                    preferred_element_type=jnp.float32)
    y2 = acc2 + s2_ref[...]
    y2 = jnp.maximum(y2, NEG_SLOPE * y2)
    o_ref[0] = y2.astype(o_ref.dtype)


# ------------------------------ param folding --------------------------------

def _fold_params(p, w_spatial, k_pad, n_pad):
    """Fold conv bias + eval-mode BN into a banded (Toeplitz) weight matrix + shift."""
    cout, cin = p["w"].shape[0], p["w"].shape[1]
    scale = p["gamma"] * jax.lax.rsqrt(p["var"] + BN_EPS)          # (Cout,)
    shift = p["beta"] - p["mean"] * scale + p["b"] * scale         # (Cout,)
    # (Cout, Cin, 3, 3) -> (kH, kW, Cin, Cout), BN scale folded per output channel
    wf = jnp.transpose(p["w"], (2, 3, 1, 0)) * scale
    # Band selector: input column w_in feeds output column w_out via tap dx iff
    # w_in == w_out + dx - 1; out-of-range taps are dropped (== zero "SAME" padding).
    sel = np.zeros((3, w_spatial, w_spatial), np.float32)
    for dx in range(3):
        for wo in range(w_spatial):
            wi = wo + dx - 1
            if 0 <= wi < w_spatial:
                sel[dx, wi, wo] = 1.0
    t = jnp.einsum("xpw,yxio->ypiwo", jnp.asarray(sel), wf)
    t = t.reshape(3, w_spatial * cin, w_spatial * cout)
    t = jnp.pad(t, ((0, 0), (0, k_pad - w_spatial * cin), (0, n_pad - w_spatial * cout)))
    s = jnp.pad(jnp.tile(shift, w_spatial), (0, n_pad - w_spatial * cout))
    return t.astype(jnp.bfloat16), s.reshape(1, n_pad).astype(jnp.float32)


# --------------------------------- wrapper -----------------------------------

def conv_encoder(x_nchw, params):
    """Matches ConvEncoder.forward: ConvBlock(in->out) then MaxPool2d(2,2). NCHW in/out."""
    n, cin, h, w = x_nchw.shape
    assert h % 2 == 0 and w % 2 == 0, "even spatial dims expected for MaxPool2d(2,2)"
    p1, p2 = params["block1"], params["block2"]
    cout = p1["w"].shape[0]

    wcout = w * cout
    k1 = _round_up(w * cin, LANE)       # layer-1 slab lane width (lane-padded)
    npad = _round_up(wcout, LANE)       # layer-1/2 output lane width (= layer-2 K)

    # NCHW -> channels-last bf16 slab (N, H+2, k1) with zero row halo + zero lane pad.
    x = jnp.transpose(x_nchw, (0, 2, 3, 1)).reshape(n, h, w * cin)
    x = jnp.pad(x, ((0, 0), (1, 1), (0, k1 - w * cin))).astype(jnp.bfloat16)

    t1, s1 = _fold_params(p1, w, k1, npad)
    t2, s2 = _fold_params(p2, w, npad, npad)

    flops = n * 2 * 3 * h * (k1 + npad) * npad
    bytes_accessed = (x.size + t1.size + t2.size + n * h * npad) * 2 \
                     + (s1.size + s2.size) * 4

    kernel = functools.partial(_conv_encoder_kernel, h=h)
    y2 = pl.pallas_call(
        kernel,
        out_shape=jax.ShapeDtypeStruct((n, h, npad), jnp.bfloat16),
        grid=(n,),
        in_specs=[
            pl.BlockSpec((1, h + 2, k1), lambda i: (i, 0, 0)),
            pl.BlockSpec((3, k1, npad), lambda i: (0, 0, 0)),   # resident weights
            pl.BlockSpec((1, npad), lambda i: (0, 0)),
            pl.BlockSpec((3, npad, npad), lambda i: (0, 0, 0)),
            pl.BlockSpec((1, npad), lambda i: (0, 0)),
        ],
        out_specs=pl.BlockSpec((1, h, npad), lambda i: (i, 0, 0)),
        scratch_shapes=[pltpu.VMEM((h + 2, npad), jnp.float32)],
        compiler_params=pltpu.CompilerParams(
            dimension_semantics=("parallel",),      # batch split across TCs (v7x)
            vmem_limit_bytes=48 * 1024 * 1024,
        ),
        cost_estimate=pl.CostEstimate(
            flops=flops, transcendentals=0, bytes_accessed=bytes_accessed),
    )(x, t1, s1, t2, s2)

    # 2x2/2 max-pool + NCHW transpose (tiny; XLA fuses with the output slice).
    y2 = y2[:, :, :wcout].astype(jnp.float32).reshape(n, h // 2, 2, w // 2, 2, cout)
    pooled = jnp.max(y2, axis=(2, 4))                               # (N, H/2, W/2, Cout)
    return jnp.transpose(pooled, (0, 3, 1, 2))                      # -> NCHW


# --------------------------- deterministic params ---------------------------

def init_params(key, cin, cout):
    def conv_bn(k, ci, co):
        k1, k2 = jax.random.split(k)
        return dict(
            w=0.1 * jax.random.normal(k1, (co, ci, 3, 3), jnp.float32),
            b=0.05 * jax.random.normal(k2, (co,), jnp.float32),
            gamma=1.0 + 0.1 * jnp.arange(co, dtype=jnp.float32),
            beta=0.02 * jnp.arange(co, dtype=jnp.float32),
            mean=0.01 * jnp.arange(co, dtype=jnp.float32),
            var=1.0 + 0.05 * jnp.arange(co, dtype=jnp.float32),
        )
    k1, k2 = jax.random.split(key)
    return dict(block1=conv_bn(k1, cin, cout), block2=conv_bn(k2, cout, cout))


# ------------------------------ pure-JAX reference ---------------------------

def reference(x_nchw, params):
    def block(x, p):  # x NHWC
        w_hwio = jnp.transpose(p["w"], (2, 3, 1, 0))
        y = jax.lax.conv_general_dilated(
            x, w_hwio, (1, 1), "SAME",
            dimension_numbers=("NHWC", "HWIO", "NHWC"),
            precision=jax.lax.Precision.HIGHEST) + p["b"]
        y = (y - p["mean"]) * jax.lax.rsqrt(p["var"] + BN_EPS) * p["gamma"] + p["beta"]
        return jnp.where(y >= 0, y, NEG_SLOPE * y)

    x = jnp.transpose(x_nchw, (0, 2, 3, 1)).astype(jnp.float32)
    x = block(x, params["block1"])
    x = block(x, params["block2"])
    x = jax.lax.reduce_window(x, -jnp.inf, jax.lax.max,
                              (1, 2, 2, 1), (1, 2, 2, 1), "VALID")
    return jnp.transpose(x, (0, 3, 1, 2))


# ---------------------------------- main -------------------------------------

if __name__ == "__main__":
    key = jax.random.PRNGKey(0)
    kx, kp = jax.random.split(key)

    N, CIN, COUT, H, W = 2, 4, 8, 16, 16          # small shapes consistent with the module
    x = jax.random.normal(kx, (N, CIN, H, W), jnp.float32)   # NCHW, like PyTorch
    params = init_params(kp, CIN, COUT)

    out = jax.block_until_ready(jax.jit(conv_encoder)(x, params))
    ref = jax.block_until_ready(reference(x, params))

    assert out.shape == (N, COUT, H // 2, W // 2), out.shape
    # bf16 MXU operands / bf16 activations vs. f32 HIGHEST reference -> loosened tol
    np.testing.assert_allclose(np.asarray(out), np.asarray(ref), rtol=5e-2, atol=5e-2)

    print("KERNEL_OK")
</pallas_src>

<mosaic_0001>
module attributes {stable_mosaic.version = 11 : i64} {
  func.func @_conv_encoder_kernel(%arg0: i32, %arg1: memref<1x18x128xbf16, #tpu.memory_space<vmem>>, %arg2: memref<3x128x128xbf16, #tpu.memory_space<vmem>>, %arg3: memref<1x128xf32, #tpu.memory_space<vmem>>, %arg4: memref<3x128x128xbf16, #tpu.memory_space<vmem>>, %arg5: memref<1x128xf32, #tpu.memory_space<vmem>>, %arg6: memref<1x16x128xbf16, #tpu.memory_space<vmem>>, %arg7: memref<18x128xf32, #tpu.memory_space<vmem>>) attributes {dimension_semantics = [#tpu.dimension_semantics<parallel>], iteration_bounds = array<i64: 2>, scalar_prefetch = 0 : i64, scratch_operands = 1 : i64, tpu.core_type = #tpu.core_type<tc>, window_params = [{transform_indices = @transform_0, window_bounds = array<i64: 1, 18, 128>}, {pipeline_mode = #tpu.pipeline_mode<synchronous>, transform_indices = @transform_1, window_bounds = array<i64: 3, 128, 128>}, {pipeline_mode = #tpu.pipeline_mode<synchronous>, transform_indices = @transform_2, window_bounds = array<i64: 1, 128>}, {pipeline_mode = #tpu.pipeline_mode<synchronous>, transform_indices = @transform_3, window_bounds = array<i64: 3, 128, 128>}, {pipeline_mode = #tpu.pipeline_mode<synchronous>, transform_indices = @transform_4, window_bounds = array<i64: 1, 128>}, {transform_indices = @transform_5, window_bounds = array<i64: 1, 16, 128>}]} {
    %c0 = arith.constant 0 : index
    %c0_0 = arith.constant 0 : index
    %c0_1 = arith.constant 0 : index
    %0 = vector.load %arg1[%c0, %c0_0, %c0_1] : memref<1x18x128xbf16, #tpu.memory_space<vmem>>, vector<1x16x128xbf16>
    %1 = vector.shape_cast %0 : vector<1x16x128xbf16> to vector<16x128xbf16>
    %c0_2 = arith.constant 0 : index
    %c0_3 = arith.constant 0 : index
    %c0_4 = arith.constant 0 : index
    %2 = vector.load %arg2[%c0_2, %c0_3, %c0_4] : memref<3x128x128xbf16, #tpu.memory_space<vmem>>, vector<1x128x128xbf16>
    %3 = vector.shape_cast %2 : vector<1x128x128xbf16> to vector<128x128xbf16>
    %cst = arith.constant dense<0.000000e+00> : vector<16x128xf32>
    %4 = tpu.matmul %1, %3, %cst {dimension_numbers = #tpu.dot_dimension_numbers<[1], [0], [0], [1], [0, 0, 1, 1], [], []>} : vector<16x128xbf16>, vector<128x128xbf16>, vector<16x128xf32> -> vector<16x128xf32>
    %c0_5 = arith.constant 0 : index
    %c1 = arith.constant 1 : index
    %c0_6 = arith.constant 0 : index
    %5 = vector.load %arg1[%c0_5, %c1, %c0_6] : memref<1x18x128xbf16, #tpu.memory_space<vmem>>, vector<1x16x128xbf16>
    %6 = vector.shape_cast %5 : vector<1x16x128xbf16> to vector<16x128xbf16>
    %c1_7 = arith.constant 1 : index
    %c0_8 = arith.constant 0 : index
    %c0_9 = arith.constant 0 : index
    %7 = vector.load %arg2[%c1_7, %c0_8, %c0_9] : memref<3x128x128xbf16, #tpu.memory_space<vmem>>, vector<1x128x128xbf16>
    %8 = vector.shape_cast %7 : vector<1x128x128xbf16> to vector<128x128xbf16>
    %cst_10 = arith.constant dense<0.000000e+00> : vector<16x128xf32>
    %9 = tpu.matmul %6, %8, %cst_10 {dimension_numbers = #tpu.dot_dimension_numbers<[1], [0], [0], [1], [0, 0, 1, 1], [], []>} : vector<16x128xbf16>, vector<128x128xbf16>, vector<16x128xf32> -> vector<16x128xf32>
    %10 = arith.addf %4, %9 : vector<16x128xf32>
    %c0_11 = arith.constant 0 : index
    %c2 = arith.constant 2 : index
    %c0_12 = arith.constant 0 : index
    %11 = vector.load %arg1[%c0_11, %c2, %c0_12] : memref<1x18x128xbf16, #tpu.memory_space<vmem>>, vector<1x16x128xbf16>
    %12 = vector.shape_cast %11 : vector<1x16x128xbf16> to vector<16x128xbf16>
    %c2_13 = arith.constant 2 : index
    %c0_14 = arith.constant 0 : index
    %c0_15 = arith.constant 0 : index
    %13 = vector.load %arg2[%c2_13, %c0_14, %c0_15] : memref<3x128x128xbf16, #tpu.memory_space<vmem>>, vector<1x128x128xbf16>
    %14 = vector.shape_cast %13 : vector<1x128x128xbf16> to vector<128x128xbf16>
    %cst_16 = arith.constant dense<0.000000e+00> : vector<16x128xf32>
    %15 = tpu.matmul %12, %14, %cst_16 {dimension_numbers = #tpu.dot_dimension_numbers<[1], [0], [0], [1], [0, 0, 1, 1], [], []>} : vector<16x128xbf16>, vector<128x128xbf16>, vector<16x128xf32> -> vector<16x128xf32>
    %16 = arith.addf %10, %15 : vector<16x128xf32>
    %c0_17 = arith.constant 0 : index
    %c0_18 = arith.constant 0 : index
    %17 = vector.load %arg3[%c0_17, %c0_18] : memref<1x128xf32, #tpu.memory_space<vmem>>, vector<1x128xf32>
    %18 = vector.broadcast %17 : vector<1x128xf32> to vector<16x128xf32>
    %19 = arith.addf %16, %18 : vector<16x128xf32>
    %cst_19 = arith.constant 0.00999999977 : f32
    %20 = vector.broadcast %cst_19 : f32 to vector<16x128xf32>
    %21 = arith.mulf %20, %19 : vector<16x128xf32>
    %22 = arith.maximumf %19, %21 : vector<16x128xf32>
    %cst_20 = arith.constant 0.000000e+00 : f32
    %23 = vector.broadcast %cst_20 : f32 to vector<18x128xf32>
    %c0_21 = arith.constant 0 : index
    %c0_22 = arith.constant 0 : index
    %24 = vector.load %arg7[%c0_21, %c0_22] : memref<18x128xf32, #tpu.memory_space<vmem>>, vector<18x128xf32>
    tpu.vector_store %arg7[%c0_21, %c0_22], %23 {strides = array<i32>} : memref<18x128xf32, #tpu.memory_space<vmem>>, vector<18x128xf32>,
    %c1_23 = arith.constant 1 : index
    %c0_24 = arith.constant 0 : index
    %25 = vector.load %arg7[%c1_23, %c0_24] : memref<18x128xf32, #tpu.memory_space<vmem>>, vector<16x128xf32>
    tpu.vector_store %arg7[%c1_23, %c0_24], %22 {strides = array<i32>} : memref<18x128xf32, #tpu.memory_space<vmem>>, vector<16x128xf32>,
    %c0_25 = arith.constant 0 : index
    %c0_26 = arith.constant 0 : index
    %26 = vector.load %arg7[%c0_25, %c0_26] : memref<18x128xf32, #tpu.memory_space<vmem>>, vector<16x128xf32>
    %27 = arith.truncf %26 : vector<16x128xf32> to vector<16x128xbf16>
    %c0_27 = arith.constant 0 : index
    %c0_28 = arith.constant 0 : index
    %c0_29 = arith.constant 0 : index
    %28 = vector.load %arg4[%c0_27, %c0_28, %c0_29] : memref<3x128x128xbf16, #tpu.memory_space<vmem>>, vector<1x128x128xbf16>
    %29 = vector.shape_cast %28 : vector<1x128x128xbf16> to vector<128x128xbf16>
    %cst_30 = arith.constant dense<0.000000e+00> : vector<16x128xf32>
    %30 = tpu.matmul %27, %29, %cst_30 {dimension_numbers = #tpu.dot_dimension_numbers<[1], [0], [0], [1], [0, 0, 1, 1], [], []>} : vector<16x128xbf16>, vector<128x128xbf16>, vector<16x128xf32> -> vector<16x128xf32>
    %c1_31 = arith.constant 1 : index
    %c0_32 = arith.constant 0 : index
    %31 = vector.load %arg7[%c1_31, %c0_32] : memref<18x128xf32, #tpu.memory_space<vmem>>, vector<16x128xf32>
    %32 = arith.truncf %31 : vector<16x128xf32> to vector<16x128xbf16>
    %c1_33 = arith.constant 1 : index
    %c0_34 = arith.constant 0 : index
    %c0_35 = arith.constant 0 : index
    %33 = vector.load %arg4[%c1_33, %c0_34, %c0_35] : memref<3x128x128xbf16, #tpu.memory_space<vmem>>, vector<1x128x128xbf16>
    %34 = vector.shape_cast %33 : vector<1x128x128xbf16> to vector<128x128xbf16>
    %cst_36 = arith.constant dense<0.000000e+00> : vector<16x128xf32>
    %35 = tpu.matmul %32, %34, %cst_36 {dimension_numbers = #tpu.dot_dimension_numbers<[1], [0], [0], [1], [0, 0, 1, 1], [], []>} : vector<16x128xbf16>, vector<128x128xbf16>, vector<16x128xf32> -> vector<16x128xf32>
    %36 = arith.addf %30, %35 : vector<16x128xf32>
    %c2_37 = arith.constant 2 : index
    %c0_38 = arith.constant 0 : index
    %37 = vector.load %arg7[%c2_37, %c0_38] : memref<18x128xf32, #tpu.memory_space<vmem>>, vector<16x128xf32>
    %38 = arith.truncf %37 : vector<16x128xf32> to vector<16x128xbf16>
    %c2_39 = arith.constant 2 : index
    %c0_40 = arith.constant 0 : index
    %c0_41 = arith.constant 0 : index
    %39 = vector.load %arg4[%c2_39, %c0_40, %c0_41] : memref<3x128x128xbf16, #tpu.memory_space<vmem>>, vector<1x128x128xbf16>
    %40 = vector.shape_cast %39 : vector<1x128x128xbf16> to vector<128x128xbf16>
    %cst_42 = arith.constant dense<0.000000e+00> : vector<16x128xf32>
    %41 = tpu.matmul %38, %40, %cst_42 {dimension_numbers = #tpu.dot_dimension_numbers<[1], [0], [0], [1], [0, 0, 1, 1], [], []>} : vector<16x128xbf16>, vector<128x128xbf16>, vector<16x128xf32> -> vector<16x128xf32>
    %42 = arith.addf %36, %41 : vector<16x128xf32>
    %c0_43 = arith.constant 0 : index
    %c0_44 = arith.constant 0 : index
    %43 = vector.load %arg5[%c0_43, %c0_44] : memref<1x128xf32, #tpu.memory_space<vmem>>, vector<1x128xf32>
    %44 = vector.broadcast %43 : vector<1x128xf32> to vector<16x128xf32>
    %45 = arith.addf %42, %44 : vector<16x128xf32>
    %cst_45 = arith.constant 0.00999999977 : f32
    %46 = vector.broadcast %cst_45 : f32 to vector<16x128xf32>
    %47 = arith.mulf %46, %45 : vector<16x128xf32>
    %48 = arith.maximumf %45, %47 : vector<16x128xf32>
    %49 = arith.truncf %48 : vector<16x128xf32> to vector<16x128xbf16>
    %c0_46 = arith.constant 0 : index
    %c0_47 = arith.constant 0 : index
    %c0_48 = arith.constant 0 : index
    %50 = vector.load %arg6[%c0_46, %c0_47, %c0_48] : memref<1x16x128xbf16, #tpu.memory_space<vmem>>, vector<1x16x128xbf16>
    %51 = vector.shape_cast %50 : vector<1x16x128xbf16> to vector<16x128xbf16>
    %52 = vector.shape_cast %49 : vector<16x128xbf16> to vector<1x16x128xbf16>
    tpu.vector_store %arg6[%c0_46, %c0_47, %c0_48], %52 {strides = array<i32>} : memref<1x16x128xbf16, #tpu.memory_space<vmem>>, vector<1x16x128xbf16>,
    return
  }
  func.func @transform_0(%arg0: i32) -> (i32, i32, i32) {
    %c0_i32 = arith.constant 0 : i32
    %c0_i32_0 = arith.constant 0 : i32
    %c0_i32_1 = arith.constant 0 : i32
    return %arg0, %c0_i32, %c0_i32_0 : i32, i32, i32
  }
  func.func @transform_1(%arg0: i32) -> (i32, i32, i32) {
    %c0_i32 = arith.constant 0 : i32
    %c0_i32_0 = arith.constant 0 : i32
    %c0_i32_1 = arith.constant 0 : i32
    %c0_i32_2 = arith.constant 0 : i32
    return %c0_i32, %c0_i32_0, %c0_i32_1 : i32, i32, i32
  }
  func.func @transform_2(%arg0: i32) -> (i32, i32) {
    %c0_i32 = arith.constant 0 : i32
    %c0_i32_0 = arith.constant 0 : i32
    %c0_i32_1 = arith.constant 0 : i32
    return %c0_i32, %c0_i32_0 : i32, i32
  }
  func.func @transform_3(%arg0: i32) -> (i32, i32, i32) {
    %c0_i32 = arith.constant 0 : i32
    %c0_i32_0 = arith.constant 0 : i32
    %c0_i32_1 = arith.constant 0 : i32
    %c0_i32_2 = arith.constant 0 : i32
    return %c0_i32, %c0_i32_0, %c0_i32_1 : i32, i32, i32
  }
  func.func @transform_4(%arg0: i32) -> (i32, i32) {
    %c0_i32 = arith.constant 0 : i32
    %c0_i32_0 = arith.constant 0 : i32
    %c0_i32_1 = arith.constant 0 : i32
    return %c0_i32, %c0_i32_0 : i32, i32
  }
  func.func @transform_5(%arg0: i32) -> (i32, i32, i32) {
    %c0_i32 = arith.constant 0 : i32
    %c0_i32_0 = arith.constant 0 : i32
    %c0_i32_1 = arith.constant 0 : i32
    return %arg0, %c0_i32, %c0_i32_0 : i32, i32, i32
  }
}

</mosaic_0001>

<llo_original>
// kernel: tile.18
$region0: #{tile.18}
  #allocation0 [shape = 's32[1]{0}', space=sflag, size = 0x4, scoped, tag = 'scoped memory for tile.18']
  %s0 = inlined_call_operand.vmem [shape: f32[8], index: 0, kind: input, shape index: {}]
  %s1 = inlined_call_operand.vmem [shape: f32[16,8], index: 1, kind: output, shape index: {}]
  // Predicated region
  $region2: #{tile.18} parent=0 // pred_check
    _
  $region3: #{tile.18} parent=0 // pred_check_branch
    %3 = sbr.rel (0) target = $region5
  $region4: #{tile.18} parent=0 // pred_region
    _
  $region5: #{tile.18} parent=0 // pred_fallthru
    _
  %v4 = vld [vmem:[%s0] ss:$0 sm:$0xff]
  %5 = vst [vmem:[%s1] sm:$0xff] %v4
  %s6 = scalar_lea.vmem %s1, 8
  %7 = vst [vmem:[%s6] sm:$0xff] %v4

// kernel: conv_encoder.1
$region0: #{conv_encoder.1}
  #allocation0 [shape = 'u32[]', space=smem, size = 0x4, offset = 0x4, fixed_abs, tag = 'smem constant byte address 0x4 - core index']
  #allocation1 [shape = 'u32[72,128]{1,0:T(1,128)}', space=vmem, size = 0x9000, scoped, tag = 'internal scratch']
  #allocation2 [shape = 'f32[18,128]{1,0:T(8,128)}', space=vmem, size = 0x3000, scoped, tag = 'scratch operand']
  %s0 = inlined_call_operand.vmem [shape: bf16[2,18,128], index: 0, kind: input, shape index: {}]
  %s1 = inlined_call_operand.vmem [shape: bf16[3,128,128], index: 1, kind: input, shape index: {}]
  %s2 = inlined_call_operand.vmem [shape: f32[1,128], index: 2, kind: input, shape index: {}]
  %s3 = inlined_call_operand.vmem [shape: bf16[3,128,128], index: 3, kind: input, shape index: {}]
  %s4 = inlined_call_operand.vmem [shape: f32[1,128], index: 4, kind: input, shape index: {}]
  %s5 = inlined_call_operand.vmem [shape: bf16[2,16,128], index: 5, kind: output, shape index: {}]
  %s6 = sld [smem:[#allocation0]]
  $region53: #{conv_encoder.1} parent=0
    _
  %s8 = ssub.s32 1, %s6
  %s9 = scalar_select 0, %s8, %s6
  loop: start=0, step=1, limit=4
  $region2: #{conv_encoder.1} parent=0 // loop_pre_header
    _
  $region3: #{conv_encoder.1} parent=0 // loop_header
    %s11 = sphi 0, %s15
    %p12 = scmp.ge.s32.totalorder %s11, 4
    %s21 = sphi 0, %s23
    %s24 = sphi 0, %s21
    %s25 = sphi 0, %s24
    %s41 = sphi 0, %s25
    %s45 = sphi 0, %s45
    %s47 = sphi 0, %s45
    %s48 = sphi 0, %s47
    %s62 = sphi 0, %s48
    %s66 = sphi 0, %s66
    %s68 = sphi 0, %s66
    %s69 = sphi 0, %s68
    %s83 = sphi 0, %s69
    %s87 = sphi 0, %s87
    %s89 = sphi 0, %s87
    %s90 = sphi 0, %s89
    %s104 = sphi 0, %s90
    %s108 = sphi 0, %s108
    %s110 = sphi 0, %s108
    %s111 = sphi 0, %s110
    %s125 = sphi 0, %s111
    %s131 = sphi 0, %s133
    %s134 = sphi 0, %s131
    %s135 = sphi 0, %s134
    %s151 = sphi 0, %s135
  $region4: #{conv_encoder.1} parent=0 // loop_header_branch
    %14 = sbr.rel (%p12) target = $region8
  $region5: #{conv_encoder.1} parent=0 // loop_body
    %s16 = ssub.s32 %s11, 1
    %s17 = ssub.s32 %s11, 2
    %s18 = sadd.s32 %s11, 1
    %s19 = ssub.s32 %s11, %s18
    %p20 = scmp.eq.s32.totalorder %s19, 0
    %s22 = sadd.s32 %s21, 1
    %s23 = scalar_select %p20, %s21, %s22
    %p26 = pneg %p20
    %p27 = scmp.eq.s32.totalorder %s11, 1
    %p28 = por %p26, %p27
    %p29 = scmp.ne.s32.totalorder %s21, %s24
    %p30 = scmp.eq.s32.totalorder %s11, 0
    %p31 = por %p29, %p30
    %p32 = scmp.ne.s32.totalorder %s21, %s24
    %p33 = scmp.eq.s32.totalorder %s16, 1
    %p34 = por %p32, %p33
    %p35 = scmp.ne.s32.totalorder %s24, %s25
    %p36 = scmp.eq.s32.totalorder %s16, 0
    %p37 = por %p35, %p36
    %p38 = scmp.ne.s32.totalorder %s24, %s25
    %p39 = scmp.eq.s32.totalorder %s17, 1
    %p40 = por %p38, %p39
    %p42 = scmp.ne.s32.totalorder %s25, %s41
    %p43 = scmp.eq.s32.totalorder %s17, 0
    %p44 = por %p42, %p43
    %s46 = sadd.s32 %s45, 1
    %p49 = scmp.eq.s32.totalorder %s11, 1
    %p50 = scmp.ne.s32.totalorder %s45, %s47
    %p51 = scmp.eq.s32.totalorder %s11, 0
    %p52 = por %p50, %p51
    %p53 = scmp.ne.s32.totalorder %s45, %s47
    %p54 = scmp.eq.s32.totalorder %s16, 1
    %p55 = por %p53, %p54
    %p56 = scmp.ne.s32.totalorder %s47, %s48
    %p57 = scmp.eq.s32.totalorder %s16, 0
    %p58 = por %p56, %p57
    %p59 = scmp.ne.s32.totalorder %s47, %s48
    %p60 = scmp.eq.s32.totalorder %s17, 1
    %p61 = por %p59, %p60
    %p63 = scmp.ne.s32.totalorder %s48, %s62
    %p64 = scmp.eq.s32.totalorder %s17, 0
    %p65 = por %p63, %p64
    %s67 = sadd.s32 %s66, 1
    %p70 = scmp.eq.s32.totalorder %s11, 1
    %p71 = scmp.ne.s32.totalorder %s66, %s68
    %p72 = scmp.eq.s32.totalorder %s11, 0
    %p73 = por %p71, %p72
    %p74 = scmp.ne.s32.totalorder %s66, %s68
    %p75 = scmp.eq.s32.totalorder %s16, 1
    %p76 = por %p74, %p75
    %p77 = scmp.ne.s32.totalorder %s68, %s69
    %p78 = scmp.eq.s32.totalorder %s16, 0
    %p79 = por %p77, %p78
    %p80 = scmp.ne.s32.totalorder %s68, %s69
    %p81 = scmp.eq.s32.totalorder %s17, 1
    %p82 = por %p80, %p81
    %p84 = scmp.ne.s32.totalorder %s69, %s83
    %p85 = scmp.eq.s32.totalorder %s17, 0
    %p86 = por %p84, %p85
    %s88 = sadd.s32 %s87, 1
    %p91 = scmp.eq.s32.totalorder %s11, 1
    %p92 = scmp.ne.s32.totalorder %s87, %s89
    %p93 = scmp.eq.s32.totalorder %s11, 0
    %p94 = por %p92, %p93
    %p95 = scmp.ne.s32.totalorder %s87, %s89
    %p96 = scmp.eq.s32.totalorder %s16, 1
    %p97 = por %p95, %p96
    %p98 = scmp.ne.s32.totalorder %s89, %s90
    %p99 = scmp.eq.s32.totalorder %s16, 0
    %p100 = por %p98, %p99
    %p101 = scmp.ne.s32.totalorder %s89, %s90
    %p102 = scmp.eq.s32.totalorder %s17, 1
    %p103 = por %p101, %p102
    %p105 = scmp.ne.s32.totalorder %s90, %s104
    %p106 = scmp.eq.s32.totalorder %s17, 0
    %p107 = por %p105, %p106
    %s109 = sadd.s32 %s108, 1
    %p112 = scmp.eq.s32.totalorder %s11, 1
    %p113 = scmp.ne.s32.totalorder %s108, %s110
    %p114 = scmp.eq.s32.totalorder %s11, 0
    %p115 = por %p113, %p114
    %p116 = scmp.ne.s32.totalorder %s108, %s110
    %p117 = scmp.eq.s32.totalorder %s16, 1
    %p118 = por %p116, %p117
    %p119 = scmp.ne.s32.totalorder %s110, %s111
    %p120 = scmp.eq.s32.totalorder %s16, 0
    %p121 = por %p119, %p120
    %p122 = scmp.ne.s32.totalorder %s110, %s111
    %p123 = scmp.eq.s32.totalorder %s17, 1
    %p124 = por %p122, %p123
    %p126 = scmp.ne.s32.totalorder %s111, %s125
    %p127 = scmp.eq.s32.totalorder %s17, 0
    %p128 = por %p126, %p127
    %s129 = ssub.s32 %s11, %s18
    %p130 = scmp.eq.s32.totalorder %s129, 0
    %s132 = sadd.s32 %s131, 1
    %s133 = scalar_select %p130, %s131, %s132
    %p136 = pneg %p130
    %p137 = scmp.eq.s32.totalorder %s11, 1
    %p138 = por %p136, %p137
    %p139 = scmp.ne.s32.totalorder %s131, %s134
    %p140 = scmp.eq.s32.totalorder %s11, 0
    %p141 = por %p139, %p140
    %p142 = scmp.ne.s32.totalorder %s131, %s134
    %p143 = scmp.eq.s32.totalorder %s16, 1
    %p144 = por %p142, %p143
    %p145 = scmp.ne.s32.totalorder %s134, %s135
    %p146 = scmp.eq.s32.totalorder %s16, 0
    %p147 = por %p145, %p146
    %p148 = scmp.ne.s32.totalorder %s134, %s135
    %p149 = scmp.eq.s32.totalorder %s17, 1
    %p150 = por %p148, %p149
    %p152 = scmp.ne.s32.totalorder %s135, %s151
    %p153 = scmp.eq.s32.totalorder %s17, 0
    %p154 = por %p152, %p153
    %p155 = scmp.le.s32.totalorder 1, %s11
    %p156 = scmp.lt.s32.totalorder %s11, 3
    %p157 = pnand %p155, %p156
    %p158 = pneg %p157
    // Predicated region
    $region9: #{conv_encoder.1} parent=5 // pred_check
      _
    $region10: #{conv_encoder.1} parent=5 // pred_check_branch
      %160 = sbr.rel (%p157) target = $region12
    $region11: #{conv_encoder.1} parent=5 // pred_region
      %s161 = ssub.s32 %s11, 1
      // Predicated region
      $region13: #{conv_encoder.1} parent=11 // pred_check
        %p162 = pneg %p58
      $region14: #{conv_encoder.1} parent=11 // pred_check_branch
        %164 = sbr.rel (%p162) target = $region16
      $region15: #{conv_encoder.1} parent=11 // pred_region
        _
      $region16: #{conv_encoder.1} parent=11 // pred_fallthru
        _
      // Predicated region
      $region17: #{conv_encoder.1} parent=11 // pred_check
        %p165 = pneg %p79
      $region18: #{conv_encoder.1} parent=11 // pred_check_branch
        %167 = sbr.rel (%p165) target = $region20
      $region19: #{conv_encoder.1} parent=11 // pred_region
        _
      $region20: #{conv_encoder.1} parent=11 // pred_fallthru
        _
      // Predicated region
      $region21: #{conv_encoder.1} parent=11 // pred_check
        %p168 = pneg %p100
      $region22: #{conv_encoder.1} parent=11 // pred_check_branch
        %170 = sbr.rel (%p168) target = $region24
      $region23: #{conv_encoder.1} parent=11 // pred_region
        _
      $region24: #{conv_encoder.1} parent=11 // pred_fallthru
        _
      // Predicated region
      $region25: #{conv_encoder.1} parent=11 // pred_check
        %p171 = pneg %p121
      $region26: #{conv_encoder.1} parent=11 // pred_check_branch
        %173 = sbr.rel (%p171) target = $region28
      $region27: #{conv_encoder.1} parent=11 // pred_region
        _
      $region28: #{conv_encoder.1} parent=11 // pred_fallthru
        _
    $region12: #{conv_encoder.1} parent=5 // pred_fallthru
      _
    %p174 = scmp.lt.s32.totalorder %s11, 2
    // Predicated region
    $region29: #{conv_encoder.1} parent=5 // pred_check
      %p175 = pneg %p174
    $region30: #{conv_encoder.1} parent=5 // pred_check_branch
      %177 = sbr.rel (%p175) target = $region32
    $region31: #{conv_encoder.1} parent=5 // pred_region
      // Predicated region
      $region33: #{conv_encoder.1} parent=31 // pred_check
        %p178 = pneg %p31
      $region34: #{conv_encoder.1} parent=31 // pred_check_branch
        %180 = sbr.rel (%p178) target = $region36
      $region35: #{conv_encoder.1} parent=31 // pred_region
        %p181 = scmp.lt.s32.totalorder %s11, 1
        %s182 = scalar_select %p181, %s11, 1
        %s183 = smul.addr %s182, 3
        %s184 = smul.addr %s183, 4
        %s185 = scalar_lea.vmem %s0, %s184
      $region36: #{conv_encoder.1} parent=31 // pred_fallthru
        _
    $region32: #{conv_encoder.1} parent=5 // pred_fallthru
      _
    %p186 = scmp.le.s32.totalorder 1, %s11
    %p187 = scmp.lt.s32.totalorder %s11, 3
    %p188 = pnand %p186, %p187
    %p189 = pneg %p188
    // Predicated region
    $region37: #{conv_encoder.1} parent=5 // pred_check
      _
    $region38: #{conv_encoder.1} parent=5 // pred_check_branch
      %191 = sbr.rel (%p188) target = $region40
    $region39: #{conv_encoder.1} parent=5 // pred_region
      %s192 = ssub.s32 %s11, 1
      %p193 = scmp.lt.s32.totalorder %s16, 1
      %s194 = scalar_select %p193, %s16, 1
      %s195 = smul.addr %s194, 3
      %s196 = smul.addr %s195, 4
      %s197 = scalar_lea.vmem %s0, %s196
      %p198 = pneg %p37
      %p199 = pneg %p34
      %p200 = pneg %p58
      %p201 = pneg %p55
      %p202 = pneg %p79
      %p203 = pneg %p76
      %p204 = pneg %p100
      %p205 = pneg %p97
      %p206 = pneg %p121
      %p207 = pneg %p118
      %p208 = pneg %p147
      %p209 = pneg %p144
      %p210 = scmp.lt.s32.totalorder %s16, 1
      %s211 = scalar_select %p210, %s16, 1
      %s212 = smul.addr %s211, 2
      %s213 = smul.addr %s212, 4
      %s214 = scalar_lea.vmem %s5, %s213
      %p215 = scmp.lt.s32.totalorder %s16, 1
      %s216 = scalar_select %p215, %s16, 1
      %s217 = smul.addr %s216, 3
      %s218 = smul.addr %s217, 4
      %s219 = scalar_lea.vmem %s0, %s218
      %p220 = scmp.lt.s32.totalorder %s16, 1
      %s221 = scalar_select %p220, %s16, 1
      %s222 = smul.addr %s221, 2
      %s223 = smul.addr %s222, 4
      %s224 = scalar_lea.vmem %s5, %s223
      %v225 = vld [vmem:[%s219] sm:$0xf]
      %v226 = vld [vmem:[%s219 + $0x4] sm:$0xf]
      %v227 = vld [vmem:[%s1] sm:$0xf]
      %v228 = vld [vmem:[%s1 + $0x4] sm:$0xf]
      %v229 = vld [vmem:[%s1 + $0x8] sm:$0xf]
      %v230 = vld [vmem:[%s1 + $0xc] sm:$0xf]
      %v231 = vld [vmem:[%s1 + $0x10] sm:$0xf]
      %v232 = vld [vmem:[%s1 + $0x14] sm:$0xf]
      %v233 = vld [vmem:[%s1 + $0x18] sm:$0xf]
      %v234 = vld [vmem:[%s1 + $0x1c] sm:$0xf]
      %v235 = vld [vmem:[%s1 + $0x20] sm:$0xf]
      %v236 = vld [vmem:[%s1 + $0x24] sm:$0xf]
      %v237 = vld [vmem:[%s1 + $0x28] sm:$0xf]
      %v238 = vld [vmem:[%s1 + $0x2c] sm:$0xf]
      %v239 = vld [vmem:[%s1 + $0x30] sm:$0xf]
      %v240 = vld [vmem:[%s1 + $0x34] sm:$0xf]
      %v241 = vld [vmem:[%s1 + $0x38] sm:$0xf]
      %v242 = vld [vmem:[%s1 + $0x3c] sm:$0xf]
      %v243 = vld [vmem:[%s219 + $0x8] sm:$0x1]
      %s244 = scalar_lea.vmem %s1, 64
      %v245 = vld [vmem:[%s244] sm:$0xf]
      %v246 = vld [vmem:[%s244 + $0x4] sm:$0xf]
      %v247 = vld [vmem:[%s244 + $0x8] sm:$0xf]
      %v248 = vld [vmem:[%s244 + $0xc] sm:$0xf]
      %v249 = vld [vmem:[%s244 + $0x10] sm:$0xf]
      %v250 = vld [vmem:[%s244 + $0x14] sm:$0xf]
      %v251 = vld [vmem:[%s244 + $0x18] sm:$0xf]
      %v252 = vld [vmem:[%s244 + $0x1c] sm:$0xf]
      %v253 = vld [vmem:[%s244 + $0x20] sm:$0xf]
      %v254 = vld [vmem:[%s244 + $0x24] sm:$0xf]
      %v255 = vld [vmem:[%s244 + $0x28] sm:$0xf]
      %v256 = vld [vmem:[%s244 + $0x2c] sm:$0xf]
      %v257 = vld [vmem:[%s244 + $0x30] sm:$0xf]
      %v258 = vld [vmem:[%s244 + $0x34] sm:$0xf]
      %v259 = vld [vmem:[%s244 + $0x38] sm:$0xf]
      %v260 = vld [vmem:[%s244 + $0x3c] sm:$0xf]
      %v264 = vunpack.c.l.b16 %v225
      %v265 = vunpack.c.l.b16 %v226
      %v266 = vunpack.c.l.b16 %v243
      %v267 = vpack.c.b16 %v265, %v264
      %v268 = vpack.c.b16 %v266, %v266
      %vm269 = vsmask.f32 7424
      %v271 = vshrl.u32 %v267, 16
      %v273 = vshll.u32 %v267, 16
      %v275 = vrot.slane %v273, 1
      %v276 = vor.u32 %v271, %v275
      %v278 = vshll.u32 %v268, 16
      %v280 = vrot.slane %v278, 1
      %v281 = vsel %vm269, %v276, %v280
      %v299 = vunpack.c.l.b16 %v245
      %v300 = vunpack.c.l.b16 %v246
      %v301 = vunpack.c.l.b16 %v247
      %v302 = vunpack.c.l.b16 %v248
      %v303 = vunpack.c.l.b16 %v249
      %v304 = vunpack.c.l.b16 %v250
      %v305 = vunpack.c.l.b16 %v251
      %v306 = vunpack.c.l.b16 %v252
      %v307 = vunpack.c.l.b16 %v253
      %v308 = vunpack.c.l.b16 %v254
      %v309 = vunpack.c.l.b16 %v255
      %v310 = vunpack.c.l.b16 %v256
      %v311 = vunpack.c.l.b16 %v257
      %v312 = vunpack.c.l.b16 %v258
      %v313 = vunpack.c.l.b16 %v259
      %v314 = vunpack.c.l.b16 %v260
      %v315 = vpack.c.b16 %v300, %v299
      %v316 = vpack.c.b16 %v302, %v301
      %v317 = vpack.c.b16 %v304, %v303
      %v318 = vpack.c.b16 %v306, %v305
      %v319 = vpack.c.b16 %v308, %v307
      %v320 = vpack.c.b16 %v310, %v309
      %v321 = vpack.c.b16 %v312, %v311
      %v322 = vpack.c.b16 %v314, %v313
      %331 = vmatpush.bf16.msra.mxu0 %v322
      %332 = vmatpush.bf16.msra.mxu0 %v321
      %333 = vmatpush.bf16.msra.mxu0 %v320
      %334 = vmatpush.bf16.msra.mxu0 %v319
      %335 = vmatpush.bf16.msra.mxu0 %v318
      %336 = vmatpush.bf16.msra.mxu0 %v317
      %337 = vmatpush.bf16.msra.mxu0 %v316
      %338 = vmatpush.bf16.msra.mxu0 %v315
      %339 = vmatmul.bf16.gmra.mxu0 %v281
      %v340 = vpop.f32.mrf.mxu0
      %v341 = vadd.f32 0.0, %v340
      %v342 = vpop.f32.mrf.mxu0
      %v343 = vadd.f32 0.0, %v342
      %344 = vdwg.mxu0
      %v362 = vunpack.c.l.b16 %v227
      %v363 = vunpack.c.l.b16 %v228
      %v364 = vunpack.c.l.b16 %v229
      %v365 = vunpack.c.l.b16 %v230
      %v366 = vunpack.c.l.b16 %v231
      %v367 = vunpack.c.l.b16 %v232
      %v368 = vunpack.c.l.b16 %v233
      %v369 = vunpack.c.l.b16 %v234
      %v370 = vunpack.c.l.b16 %v235
      %v371 = vunpack.c.l.b16 %v236
      %v372 = vunpack.c.l.b16 %v237
      %v373 = vunpack.c.l.b16 %v238
      %v374 = vunpack.c.l.b16 %v239
      %v375 = vunpack.c.l.b16 %v240
      %v376 = vunpack.c.l.b16 %v241
      %v377 = vunpack.c.l.b16 %v242
      %v378 = vpack.c.b16 %v363, %v362
      %v379 = vpack.c.b16 %v365, %v364
      %v380 = vpack.c.b16 %v367, %v366
      %v381 = vpack.c.b16 %v369, %v368
      %v382 = vpack.c.b16 %v371, %v370
      %v383 = vpack.c.b16 %v373, %v372
      %v384 = vpack.c.b16 %v375, %v374
      %v385 = vpack.c.b16 %v377, %v376
      %394 = vmatpush.bf16.msra.mxu0 %v385
      %395 = vmatpush.bf16.msra.mxu0 %v384
      %396 = vmatpush.bf16.msra.mxu0 %v383
      %397 = vmatpush.bf16.msra.mxu0 %v382
      %398 = vmatpush.bf16.msra.mxu0 %v381
      %399 = vmatpush.bf16.msra.mxu0 %v380
      %400 = vmatpush.bf16.msra.mxu0 %v379
      %401 = vmatpush.bf16.msra.mxu0 %v378
      %402 = vmatmul.bf16.gmra.mxu0 %v267
      %v403 = vpop.f32.mrf.mxu0
      %v404 = vadd.f32 %v341, %v403
      %v405 = vpop.f32.mrf.mxu0
      %v406 = vadd.f32 %v343, %v405
      %407 = vdwg.mxu0
      %v408 = vld [vmem:[%s219] sm:$0xe]
      %s409 = scalar_lea.vmem %s1, 128
      %v410 = vld [vmem:[%s409] sm:$0xf]
      %v411 = vld [vmem:[%s409 + $0x4] sm:$0xf]
      %v412 = vld [vmem:[%s409 + $0x8] sm:$0xf]
      %v413 = vld [vmem:[%s409 + $0xc] sm:$0xf]
      %v414 = vld [vmem:[%s409 + $0x10] sm:$0xf]
      %v415 = vld [vmem:[%s409 + $0x14] sm:$0xf]
      %v416 = vld [vmem:[%s409 + $0x18] sm:$0xf]
      %v417 = vld [vmem:[%s409 + $0x1c] sm:$0xf]
      %v418 = vld [vmem:[%s409 + $0x20] sm:$0xf]
      %v419 = vld [vmem:[%s409 + $0x24] sm:$0xf]
      %v420 = vld [vmem:[%s409 + $0x28] sm:$0xf]
      %v421 = vld [vmem:[%s409 + $0x2c] sm:$0xf]
      %v422 = vld [vmem:[%s409 + $0x30] sm:$0xf]
      %v423 = vld [vmem:[%s409 + $0x34] sm:$0xf]
      %v424 = vld [vmem:[%s409 + $0x38] sm:$0xf]
      %v425 = vld [vmem:[%s409 + $0x3c] sm:$0xf]
      %v427 = vunpack.c.l.b16 %v408
      %v428 = vpack.c.b16 %v265, %v427
      %vm429 = vcmask 1046528
      %v430 = vrot.slane %v428, 1
      %v431 = vrot.slane %v268, 1
      %v432 = vsel %vm429, %v430, %v431
      %v450 = vunpack.c.l.b16 %v410
      %v451 = vunpack.c.l.b16 %v411
      %v452 = vunpack.c.l.b16 %v412
      %v453 = vunpack.c.l.b16 %v413
      %v454 = vunpack.c.l.b16 %v414
      %v455 = vunpack.c.l.b16 %v415
      %v456 = vunpack.c.l.b16 %v416
      %v457 = vunpack.c.l.b16 %v417
      %v458 = vunpack.c.l.b16 %v418
      %v459 = vunpack.c.l.b16 %v419
      %v460 = vunpack.c.l.b16 %v420
      %v461 = vunpack.c.l.b16 %v421
      %v462 = vunpack.c.l.b16 %v422
      %v463 = vunpack.c.l.b16 %v423
      %v464 = vunpack.c.l.b16 %v424
      %v465 = vunpack.c.l.b16 %v425
      %v466 = vpack.c.b16 %v451, %v450
      %v467 = vpack.c.b16 %v453, %v452
      %v468 = vpack.c.b16 %v455, %v454
      %v469 = vpack.c.b16 %v457, %v456
      %v470 = vpack.c.b16 %v459, %v458
      %v471 = vpack.c.b16 %v461, %v460
      %v472 = vpack.c.b16 %v463, %v462
      %v473 = vpack.c.b16 %v465, %v464
      %482 = vmatpush.bf16.msra.mxu0 %v473
      %483 = vmatpush.bf16.msra.mxu0 %v472
      %484 = vmatpush.bf16.msra.mxu0 %v471
      %485 = vmatpush.bf16.msra.mxu0 %v470
      %486 = vmatpush.bf16.msra.mxu0 %v469
      %487 = vmatpush.bf16.msra.mxu0 %v468
      %488 = vmatpush.bf16.msra.mxu0 %v467
      %489 = vmatpush.bf16.msra.mxu0 %v466
      %490 = vmatmul.bf16.gmra.mxu0 %v432
      %v491 = vpop.f32.mrf.mxu0
      %v492 = vadd.f32 0.0, %v491
      %v493 = vpop.f32.mrf.mxu0
      %v494 = vadd.f32 0.0, %v493
      %495 = vdwg.mxu0
      %v496 = vadd.f32 %v404, %v492
      %v497 = vadd.f32 %v406, %v494
      %v498 = vld [vmem:[%s2] sm:$0x1]
      %v500 = vperm.slane %v498, 0
      %v502 = vadd.f32 %v496, %v500
      %v503 = vadd.f32 %v497, %v500
      %v504 = vmul.f32 %v502, 0.01
      %v505 = vmul.f32 %v503, 0.01
      %v506 = vmax.f32 %v502, %v504
      %v507 = vmax.f32 %v503, %v505
      %508 = vst [vmem:[#allocation2] sm:$0xff] 0.0
      %509 = vst [vmem:[#allocation2 + $0x8] sm:$0xff] 0.0
      %510 = vst [vmem:[#allocation2 + $0x10] sm:$0x3] 0.0
      %511 = vst [vmem:[#allocation2 + $0x1] sm:$0xff] %v506
      %512 = vst [vmem:[#allocation2 + $0x9] sm:$0xff] %v507
      %v513 = vld [vmem:[#allocation2] sm:$0xff]
      %v514 = vld [vmem:[#allocation2 + $0x8] sm:$0xff]
      %v515 = vpack.c.bf16 %v514, %v513
      %v516 = vld [vmem:[%s3] sm:$0xf]
      %v517 = vld [vmem:[%s3 + $0x4] sm:$0xf]
      %v518 = vld [vmem:[%s3 + $0x8] sm:$0xf]
      %v519 = vld [vmem:[%s3 + $0xc] sm:$0xf]
      %v520 = vld [vmem:[%s3 + $0x10] sm:$0xf]
      %v521 = vld [vmem:[%s3 + $0x14] sm:$0xf]
      %v522 = vld [vmem:[%s3 + $0x18] sm:$0xf]
      %v523 = vld [vmem:[%s3 + $0x1c] sm:$0xf]
      %v524 = vld [vmem:[%s3 + $0x20] sm:$0xf]
      %v525 = vld [vmem:[%s3 + $0x24] sm:$0xf]
      %v526 = vld [vmem:[%s3 + $0x28] sm:$0xf]
      %v527 = vld [vmem:[%s3 + $0x2c] sm:$0xf]
      %v528 = vld [vmem:[%s3 + $0x30] sm:$0xf]
      %v529 = vld [vmem:[%s3 + $0x34] sm:$0xf]
      %v530 = vld [vmem:[%s3 + $0x38] sm:$0xf]
      %v531 = vld [vmem:[%s3 + $0x3c] sm:$0xf]
      %v532 = vld [vmem:[#allocation2 + $0x1] sm:$0xff]
      %v533 = vld [vmem:[#allocation2 + $0x9] sm:$0xff]
      %v534 = vpack.c.bf16 %v533, %v532
      %s535 = scalar_lea.vmem %s3, 64
      %v536 = vld [vmem:[%s535] sm:$0xf]
      %v537 = vld [vmem:[%s535 + $0x4] sm:$0xf]
      %v538 = vld [vmem:[%s535 + $0x8] sm:$0xf]
      %v539 = vld [vmem:[%s535 + $0xc] sm:$0xf]
      %v540 = vld [vmem:[%s535 + $0x10] sm:$0xf]
      %v541 = vld [vmem:[%s535 + $0x14] sm:$0xf]
      %v542 = vld [vmem:[%s535 + $0x18] sm:$0xf]
      %v543 = vld [vmem:[%s535 + $0x1c] sm:$0xf]
      %v544 = vld [vmem:[%s535 + $0x20] sm:$0xf]
      %v545 = vld [vmem:[%s535 + $0x24] sm:$0xf]
      %v546 = vld [vmem:[%s535 + $0x28] sm:$0xf]
      %v547 = vld [vmem:[%s535 + $0x2c] sm:$0xf]
      %v548 = vld [vmem:[%s535 + $0x30] sm:$0xf]
      %v549 = vld [vmem:[%s535 + $0x34] sm:$0xf]
      %v550 = vld [vmem:[%s535 + $0x38] sm:$0xf]
      %v551 = vld [vmem:[%s535 + $0x3c] sm:$0xf]
      %v568 = vunpack.c.l.b16 %v536
      %v569 = vunpack.c.l.b16 %v537
      %v570 = vunpack.c.l.b16 %v538
      %v571 = vunpack.c.l.b16 %v539
      %v572 = vunpack.c.l.b16 %v540
      %v573 = vunpack.c.l.b16 %v541
      %v574 = vunpack.c.l.b16 %v542
      %v575 = vunpack.c.l.b16 %v543
      %v576 = vunpack.c.l.b16 %v544
      %v577 = vunpack.c.l.b16 %v545
      %v578 = vunpack.c.l.b16 %v546
      %v579 = vunpack.c.l.b16 %v547
      %v580 = vunpack.c.l.b16 %v548
      %v581 = vunpack.c.l.b16 %v549
      %v582 = vunpack.c.l.b16 %v550
      %v583 = vunpack.c.l.b16 %v551
      %v584 = vpack.c.b16 %v569, %v568
      %v585 = vpack.c.b16 %v571, %v570
      %v586 = vpack.c.b16 %v573, %v572
      %v587 = vpack.c.b16 %v575, %v574
      %v588 = vpack.c.b16 %v577, %v576
      %v589 = vpack.c.b16 %v579, %v578
      %v590 = vpack.c.b16 %v581, %v580
      %v591 = vpack.c.b16 %v583, %v582
      %600 = vmatpush.bf16.msra.mxu0 %v591
      %601 = vmatpush.bf16.msra.mxu0 %v590
      %602 = vmatpush.bf16.msra.mxu0 %v589
      %603 = vmatpush.bf16.msra.mxu0 %v588
      %604 = vmatpush.bf16.msra.mxu0 %v587
      %605 = vmatpush.bf16.msra.mxu0 %v586
      %606 = vmatpush.bf16.msra.mxu0 %v585
      %607 = vmatpush.bf16.msra.mxu0 %v584
      %608 = vmatmul.bf16.gmra.mxu0 %v534
      %v609 = vpop.f32.mrf.mxu0
      %v610 = vadd.f32 0.0, %v609
      %v611 = vpop.f32.mrf.mxu0
      %v612 = vadd.f32 0.0, %v611
      %613 = vdwg.mxu0
      %v630 = vunpack.c.l.b16 %v516
      %v631 = vunpack.c.l.b16 %v517
      %v632 = vunpack.c.l.b16 %v518
      %v633 = vunpack.c.l.b16 %v519
      %v634 = vunpack.c.l.b16 %v520
      %v635 = vunpack.c.l.b16 %v521
      %v636 = vunpack.c.l.b16 %v522
      %v637 = vunpack.c.l.b16 %v523
      %v638 = vunpack.c.l.b16 %v524
      %v639 = vunpack.c.l.b16 %v525
      %v640 = vunpack.c.l.b16 %v526
      %v641 = vunpack.c.l.b16 %v527
      %v642 = vunpack.c.l.b16 %v528
      %v643 = vunpack.c.l.b16 %v529
      %v644 = vunpack.c.l.b16 %v530
      %v645 = vunpack.c.l.b16 %v531
      %v646 = vpack.c.b16 %v631, %v630
      %v647 = vpack.c.b16 %v633, %v632
      %v648 = vpack.c.b16 %v635, %v634
      %v649 = vpack.c.b16 %v637, %v636
      %v650 = vpack.c.b16 %v639, %v638
      %v651 = vpack.c.b16 %v641, %v640
      %v652 = vpack.c.b16 %v643, %v642
      %v653 = vpack.c.b16 %v645, %v644
      %662 = vmatpush.bf16.msra.mxu0 %v653
      %663 = vmatpush.bf16.msra.mxu0 %v652
      %664 = vmatpush.bf16.msra.mxu0 %v651
      %665 = vmatpush.bf16.msra.mxu0 %v650
      %666 = vmatpush.bf16.msra.mxu0 %v649
      %667 = vmatpush.bf16.msra.mxu0 %v648
      %668 = vmatpush.bf16.msra.mxu0 %v647
      %669 = vmatpush.bf16.msra.mxu0 %v646
      %670 = vmatmul.bf16.gmra.mxu0 %v515
      %v671 = vpop.f32.mrf.mxu0
      %v672 = vadd.f32 %v610, %v671
      %v673 = vpop.f32.mrf.mxu0
      %v674 = vadd.f32 %v612, %v673
      %675 = vdwg.mxu0
      %v676 = vld [vmem:[#allocation2 + $0x2] sm:$0xff]
      %v677 = vld [vmem:[#allocation2 + $0xa] sm:$0xff]
      %v678 = vpack.c.bf16 %v677, %v676
      %s679 = scalar_lea.vmem %s3, 128
      %v680 = vld [vmem:[%s679] sm:$0xf]
      %v681 = vld [vmem:[%s679 + $0x4] sm:$0xf]
      %v682 = vld [vmem:[%s679 + $0x8] sm:$0xf]
      %v683 = vld [vmem:[%s679 + $0xc] sm:$0xf]
      %v684 = vld [vmem:[%s679 + $0x10] sm:$0xf]
      %v685 = vld [vmem:[%s679 + $0x14] sm:$0xf]
      %v686 = vld [vmem:[%s679 + $0x18] sm:$0xf]
      %v687 = vld [vmem:[%s679 + $0x1c] sm:$0xf]
      %v688 = vld [vmem:[%s679 + $0x20] sm:$0xf]
      %v689 = vld [vmem:[%s679 + $0x24] sm:$0xf]
      %v690 = vld [vmem:[%s679 + $0x28] sm:$0xf]
      %v691 = vld [vmem:[%s679 + $0x2c] sm:$0xf]
      %v692 = vld [vmem:[%s679 + $0x30] sm:$0xf]
      %v693 = vld [vmem:[%s679 + $0x34] sm:$0xf]
      %v694 = vld [vmem:[%s679 + $0x38] sm:$0xf]
      %v695 = vld [vmem:[%s679 + $0x3c] sm:$0xf]
      %v712 = vunpack.c.l.b16 %v680
      %v713 = vunpack.c.l.b16 %v681
      %v714 = vunpack.c.l.b16 %v682
      %v715 = vunpack.c.l.b16 %v683
      %v716 = vunpack.c.l.b16 %v684
      %v717 = vunpack.c.l.b16 %v685
      %v718 = vunpack.c.l.b16 %v686
      %v719 = vunpack.c.l.b16 %v687
      %v720 = vunpack.c.l.b16 %v688
      %v721 = vunpack.c.l.b16 %v689
      %v722 = vunpack.c.l.b16 %v690
      %v723 = vunpack.c.l.b16 %v691
      %v724 = vunpack.c.l.b16 %v692
      %v725 = vunpack.c.l.b16 %v693
      %v726 = vunpack.c.l.b16 %v694
      %v727 = vunpack.c.l.b16 %v695
      %v728 = vpack.c.b16 %v713, %v712
      %v729 = vpack.c.b16 %v715, %v714
      %v730 = vpack.c.b16 %v717, %v716
      %v731 = vpack.c.b16 %v719, %v718
      %v732 = vpack.c.b16 %v721, %v720
      %v733 = vpack.c.b16 %v723, %v722
      %v734 = vpack.c.b16 %v725, %v724
      %v735 = vpack.c.b16 %v727, %v726
      %744 = vmatpush.bf16.msra.mxu0 %v735
      %745 = vmatpush.bf16.msra.mxu0 %v734
      %746 = vmatpush.bf16.msra.mxu0 %v733
      %747 = vmatpush.bf16.msra.mxu0 %v732
      %748 = vmatpush.bf16.msra.mxu0 %v731
      %749 = vmatpush.bf16.msra.mxu0 %v730
      %750 = vmatpush.bf16.msra.mxu0 %v729
      %751 = vmatpush.bf16.msra.mxu0 %v728
      %752 = vmatmul.bf16.gmra.mxu0 %v678
      %v753 = vpop.f32.mrf.mxu0
      %v754 = vadd.f32 0.0, %v753
      %v755 = vpop.f32.mrf.mxu0
      %v756 = vadd.f32 0.0, %v755
      %757 = vdwg.mxu0
      %v758 = vadd.f32 %v672, %v754
      %v759 = vadd.f32 %v674, %v756
      %v760 = vld [vmem:[%s4] sm:$0x1]
      %v762 = vperm.slane %v760, 0
      %v764 = vadd.f32 %v758, %v762
      %v765 = vadd.f32 %v759, %v762
      %v766 = vmul.f32 %v764, 0.01
      %v767 = vmul.f32 %v765, 0.01
      %v768 = vmax.f32 %v764, %v766
      %v769 = vmax.f32 %v765, %v767
      %v770 = vpack.c.bf16 %v768, %v768
      %v771 = vpack.c.bf16 %v769, %v769
      %772 = vst [vmem:[%s224] sm:$0xf] %v770
      %773 = vst [vmem:[%s224 + $0x4] sm:$0xf] %v771
      %p774 = scmp.lt.s32.totalorder %s16, 1
      %s775 = scalar_select %p774, %s16, 1
      %s776 = smul.addr %s775, 2
      %s777 = smul.addr %s776, 4
      %s778 = scalar_lea.vmem %s5, %s777
      // Predicated region
      $region41: #{conv_encoder.1} parent=39 // pred_check
        %p779 = pneg %p144
      $region42: #{conv_encoder.1} parent=39 // pred_check_branch
        %781 = sbr.rel (%p779) target = $region44
      $region43: #{conv_encoder.1} parent=39 // pred_region
        _
      $region44: #{conv_encoder.1} parent=39 // pred_fallthru
        _
    $region40: #{conv_encoder.1} parent=5 // pred_fallthru
      _
    %p782 = scmp.le.s32.totalorder 2, %s11
    // Predicated region
    $region45: #{conv_encoder.1} parent=5 // pred_check
      %p783 = pneg %p782
    $region46: #{conv_encoder.1} parent=5 // pred_check_branch
      %785 = sbr.rel (%p783) target = $region48
    $region47: #{conv_encoder.1} parent=5 // pred_region
      %s786 = ssub.s32 %s11, 2
      // Predicated region
      $region49: #{conv_encoder.1} parent=47 // pred_check
        %p787 = pneg %p150
      $region50: #{conv_encoder.1} parent=47 // pred_check_branch
        %789 = sbr.rel (%p787) target = $region52
      $region51: #{conv_encoder.1} parent=47 // pred_region
        %p790 = scmp.lt.s32.totalorder %s17, 1
        %s791 = scalar_select %p790, %s17, 1
        %s792 = smul.addr %s791, 2
        %s793 = smul.addr %s792, 4
        %s794 = scalar_lea.vmem %s5, %s793
      $region52: #{conv_encoder.1} parent=47 // pred_fallthru
        _
    $region48: #{conv_encoder.1} parent=5 // pred_fallthru
      _
  $region6: #{conv_encoder.1} parent=0 // loop_footer
    %s15 = sadd.s32 1, %s11
  $region7: #{conv_encoder.1} parent=0 // loop_footer_branch
    %10 = sbr.rel target = $region3
  $region8: #{conv_encoder.1} parent=0 // loop_exit
    _

</llo_original>
